<compile_context>
chip_gen: v7x
topology: tpu7x:2x2x1
jax: 0.10.0
libtpu: 0.0.40
codegen_flags: <defaults>
</compile_context>

<pallas_src>
import functools

import jax
import jax.numpy as jnp
from jax.experimental import pallas as pl
from jax.experimental.pallas import tpu as pltpu


def _round_up(x, m):
    return (x + m - 1) // m * m


def _pick_tile(total, max_tile, granule):
    """Largest multiple of `granule` <= max_tile that divides `total`."""
    best = granule
    t = granule
    limit = min(total, max_tile)
    while t <= limit:
        if total % t == 0:
            best = t
        t += granule
    return best


# ---------------------------------------------------------------------------
# Kernels
# ---------------------------------------------------------------------------
def _small_fused_kernel(x_ref, w_ref, b_ref, o_ref, *, compute_dtype):
    # Whole problem resident in VMEM: one matmul, bias add, one store.
    x = x_ref[...].astype(compute_dtype)
    o_ref[...] = (jnp.dot(x, w_ref[...], preferred_element_type=jnp.float32)
                  + b_ref[...])


def _tiled_fused_kernel(x_ref, w_ref, b_ref, o_ref, *, compute_dtype):
    # x: (bt, tk)  w: (tk, tn)  b: (1, tn)  o: (bt, tn) f32 (resident over K)
    k = pl.program_id(2)

    @pl.when(k == 0)
    def _():
        o_ref[...] = jnp.zeros_like(o_ref)

    x = x_ref[...].astype(compute_dtype)
    o_ref[...] += jnp.dot(x, w_ref[...], preferred_element_type=jnp.float32)

    @pl.when(k == pl.num_programs(2) - 1)
    def _():
        o_ref[...] += b_ref[...]          # (bt, tn) + (1, tn) broadcast


# ---------------------------------------------------------------------------
# Parameters
# ---------------------------------------------------------------------------
def init_params(key, *, in_features, word_emb_size):
    """Raw (PyTorch-equivalent) Linear parameters in f32."""
    k1, k2 = jax.random.split(key)
    scale = 0.1
    return {
        # nn.Linear weight stored transposed: (in_features, out_features)
        "linear_w_t": scale * jax.random.normal(
            k1, (in_features, word_emb_size), jnp.float32),
        "linear_b": scale * jax.random.normal(k2, (word_emb_size,), jnp.float32),
    }


def prepare_kernel_params(params, *, compute_dtype=jnp.bfloat16):
    """One-time (hoisted out of the forward path) pad + cast of the frozen weight.

    Pads in/out features to multiples of 128 (lane granule) and stores the
    weight in `compute_dtype` (default bf16 for the native MXU path).
    """
    w_t = params["linear_w_t"]                 # (F, E)
    b = params["linear_b"]                     # (E,)
    F, E = w_t.shape
    F_pad = _round_up(F, 128)
    E_pad = _round_up(E, 128)
    w_p = jnp.pad(w_t, ((0, F_pad - F), (0, E_pad - E))).astype(compute_dtype)
    b_p = jnp.pad(b.reshape(1, -1), ((0, 0), (0, E_pad - E))).astype(jnp.float32)
    return {"w_padded": w_p, "b_padded": b_p}


# ---------------------------------------------------------------------------
# Forward: x.view(B, -1) @ W^T + b
# ---------------------------------------------------------------------------
def encoder_forward(kernel_params, feats, *, out_features,
                    small_path_bytes=4 << 20,
                    max_tile_b=256, max_tile_n=256, max_tile_k=512):
    """feats: output of the frozen backbone, shape (B, ...); flattened to (B, F)."""
    w_p = kernel_params["w_padded"]            # (F_pad, E_pad), compute dtype
    b_p = kernel_params["b_padded"]            # (1, E_pad), f32
    compute_dtype = w_p.dtype
    F_pad, E_pad = w_p.shape
    E = out_features

    B = feats.shape[0]
    x = feats.reshape(B, -1)                   # x.view(x.size()[0], -1)
    F = x.shape[1]
    if F > F_pad:
        raise ValueError(f"feature size {F} exceeds prepared weight K={F_pad}")
    if F != F_pad:
        # Keep explicit zero K-padding (OOB block reads could be garbage and
        # would corrupt the accumulator).
        x = jnp.pad(x, ((0, 0), (0, F_pad - F)))

    itemsize_x = x.dtype.itemsize
    itemsize_w = w_p.dtype.itemsize

    # ---------------- Fast path: everything fits in VMEM, no grid ----------
    small_bytes = (B * F_pad * itemsize_x + F_pad * E_pad * itemsize_w
                   + E_pad * 4 + B * E_pad * 4)
    if small_bytes <= small_path_bytes:
        out_pad = pl.pallas_call(
            functools.partial(_small_fused_kernel, compute_dtype=compute_dtype),
            out_shape=jax.ShapeDtypeStruct((B, E_pad), jnp.float32),
        )(x, w_p, b_p)
        return out_pad[:, :E]

    # ---------------- Tiled path ------------------------------------------
    row_granule = 16 if compute_dtype == jnp.bfloat16 else 8
    B_pad = _round_up(B, row_granule)
    if B_pad != B:
        x = jnp.pad(x, ((0, B_pad - B), (0, 0)))

    bt = _pick_tile(B_pad, max_tile_b, row_granule)
    tn = _pick_tile(E_pad, max_tile_n, 128)
    tk = _pick_tile(F_pad, max_tile_k, 128)

    nb, nn, nk = B_pad // bt, E_pad // tn, F_pad // tk
    # Give the v7x megacore at least two parallel blocks when possible.
    if nb * nn < 2 and E_pad >= 256:
        tn = 128
        nn = E_pad // tn

    # Tile footprint (double-buffered inputs/outputs) + headroom.
    footprint = (2 * bt * tk * itemsize_x + 2 * tk * tn * itemsize_w
                 + 2 * tn * 4 + 2 * bt * tn * 4)
    vmem_limit = min(max(int(1.5 * footprint) + (1 << 20), 8 << 20), 32 << 20)

    out_pad = pl.pallas_call(
        functools.partial(_tiled_fused_kernel, compute_dtype=compute_dtype),
        out_shape=jax.ShapeDtypeStruct((B_pad, E_pad), jnp.float32),
        grid_spec=pltpu.PrefetchScalarGridSpec(
            num_scalar_prefetch=0,
            grid=(nb, nn, nk),                                   # K last
            in_specs=[
                pl.BlockSpec((bt, tk), lambda b, n, k: (b, k)),  # activations
                pl.BlockSpec((tk, tn), lambda b, n, k: (k, n)),  # weight tile
                pl.BlockSpec((1, tn), lambda b, n, k: (0, n)),   # bias tile
            ],
            out_specs=pl.BlockSpec((bt, tn), lambda b, n, k: (b, n)),
        ),
        compiler_params=pltpu.CompilerParams(
            dimension_semantics=("parallel", "parallel", "arbitrary"),
            vmem_limit_bytes=vmem_limit),
    )(x, w_p, b_p)

    return out_pad[:B, :E]


if __name__ == "__main__":
    B = 2                 # batch
    IN_FEATURES = 512     # model.fc.in_features (e.g. resnet18 trunk output channels)
    WORD_EMB = 256        # word_emb_size

    key = jax.random.PRNGKey(0)
    kp, kf, kf2 = jax.random.split(key, 3)
    raw_params = init_params(kp, in_features=IN_FEATURES, word_emb_size=WORD_EMB)
    # One-time pad + bf16 cast of the frozen linear weight (hoisted out of the
    # per-call path).
    kparams = prepare_kernel_params(raw_params)

    # Output of the frozen backbone (trunk + global avg-pool): (B, C, 1, 1).
    feats = jax.random.normal(kf, (B, IN_FEATURES, 1, 1), jnp.float32)

    fwd = jax.jit(lambda p, f: encoder_forward(p, f, out_features=WORD_EMB))
    out = fwd(kparams, feats)
    jax.block_until_ready(out)

    ref = feats.reshape(B, -1) @ raw_params["linear_w_t"] + raw_params["linear_b"]
    assert out.shape == (B, WORD_EMB) and out.dtype == jnp.float32
    # bf16 compute / f32 accumulation vs f32 reference.
    assert jnp.allclose(out, ref, rtol=5e-2, atol=5e-2), float(
        jnp.max(jnp.abs(out - ref)))

    # Also exercise the tiled (large-batch) path to validate both code paths.
    B2 = 48
    feats2 = jax.random.normal(kf2, (B2, IN_FEATURES, 1, 1), jnp.float32)
    fwd_tiled = jax.jit(lambda p, f: encoder_forward(
        p, f, out_features=WORD_EMB, small_path_bytes=0))
    out2 = fwd_tiled(kparams, feats2)
    jax.block_until_ready(out2)
    ref2 = feats2.reshape(B2, -1) @ raw_params["linear_w_t"] + raw_params["linear_b"]
    assert out2.shape == (B2, WORD_EMB)
    assert jnp.allclose(out2, ref2, rtol=5e-2, atol=5e-2), float(
        jnp.max(jnp.abs(out2 - ref2)))

    print("KERNEL_OK")
</pallas_src>

<mosaic_0001>
module attributes {stable_mosaic.version = 11 : i64} {
  func.func @_small_fused_kernel(%arg0: memref<2x512xf32, #tpu.memory_space<vmem>>, %arg1: memref<512x256xbf16, #tpu.memory_space<vmem>>, %arg2: memref<1x256xf32, #tpu.memory_space<vmem>>, %arg3: memref<2x256xf32, #tpu.memory_space<vmem>>) attributes {dimension_semantics = [], scalar_prefetch = 0 : i64, scratch_operands = 0 : i64, tpu.core_type = #tpu.core_type<tc>} {
    %c0 = arith.constant 0 : index
    %c0_0 = arith.constant 0 : index
    %0 = vector.load %arg0[%c0, %c0_0] : memref<2x512xf32, #tpu.memory_space<vmem>>, vector<2x512xf32>
    %1 = arith.truncf %0 : vector<2x512xf32> to vector<2x512xbf16>
    %c0_1 = arith.constant 0 : index
    %c0_2 = arith.constant 0 : index
    %2 = vector.load %arg1[%c0_1, %c0_2] : memref<512x256xbf16, #tpu.memory_space<vmem>>, vector<512x256xbf16>
    %cst = arith.constant dense<0.000000e+00> : vector<2x256xf32>
    %3 = tpu.matmul %1, %2, %cst {dimension_numbers = #tpu.dot_dimension_numbers<[1], [0], [0], [1], [0, 0, 1, 1], [], []>} : vector<2x512xbf16>, vector<512x256xbf16>, vector<2x256xf32> -> vector<2x256xf32>
    %c0_3 = arith.constant 0 : index
    %c0_4 = arith.constant 0 : index
    %4 = vector.load %arg2[%c0_3, %c0_4] : memref<1x256xf32, #tpu.memory_space<vmem>>, vector<1x256xf32>
    %5 = vector.broadcast %4 : vector<1x256xf32> to vector<2x256xf32>
    %6 = arith.addf %3, %5 : vector<2x256xf32>
    %c0_5 = arith.constant 0 : index
    %c0_6 = arith.constant 0 : index
    %7 = vector.load %arg3[%c0_5, %c0_6] : memref<2x256xf32, #tpu.memory_space<vmem>>, vector<2x256xf32>
    tpu.vector_store %arg3[%c0_5, %c0_6], %6 {strides = array<i32>} : memref<2x256xf32, #tpu.memory_space<vmem>>, vector<2x256xf32>,
    return
  }
}

</mosaic_0001>

<llo_original>
// kernel: _lambda_.1
$region0: #{_lambda_.1}
  #allocation0 [shape = 'u32[]', space=smem, size = 0x4, offset = 0x4, fixed_abs, tag = 'smem constant byte address 0x4 - core index']
  #allocation1 [shape = 'u32[144,128]{1,0:T(1,128)}', space=vmem, size = 0x12000, scoped, tag = 'internal scratch']
  %s0 = inlined_call_operand.vmem [shape: f32[2,512], index: 0, kind: input, shape index: {}]
  %s1 = inlined_call_operand.hbm [shape: bf16[512,256], index: 1, kind: input, shape index: {}]
  %s2 = inlined_call_operand.vmem [shape: f32[1,256], index: 2, kind: input, shape index: {}]
  %s3 = inlined_call_operand.hbm [shape: f32[2,256], index: 3, kind: output, shape index: {}]
  %s4 = sld [smem:[#allocation0]]
  $region26: #{_lambda_.1} parent=0
    _
  %s6 = ssub.s32 1, %s4
  %s7 = scalar_select 0, %s6, %s4
  $region1: #{_lambda_.1} parent=0
    #allocation2 [shape = 'u8[262144]{0}', space=vmem, size = 0x40000, scoped, tag = 'input window, operand 1, single buffered']
    #allocation3 [shape = 's32[1]{0}', space=sflag, size = 0x4, scoped, tag = 'scoped memory for _lambda_.1']
    #allocation4 [shape = 's32[1]{0}', space=sflag, size = 0x4, scoped, tag = 'scoped memory for _lambda_.1']
    #allocation5 [shape = 'u8[2048]{0}', space=vmem, size = 0x800, scoped, tag = 'output window, operand 0, single buffered']
    %8 = vsyncpa [#allocation3], 0
    %9 = vsyncpa [#allocation4], 0
    // Predicated region
    $region2: #{_lambda_.1} parent=1 // pred_check
      _
    $region3: #{_lambda_.1} parent=1 // pred_check_branch
      %11 = sbr.rel (0) target = $region5
    $region4: #{_lambda_.1} parent=1 // pred_region
      _
    $region5: #{_lambda_.1} parent=1 // pred_fallthru
      _
    // Predicated region
    $region6: #{_lambda_.1} parent=1 // pred_check
      _
    $region7: #{_lambda_.1} parent=1 // pred_check_branch
      %13 = sbr.rel (0) target = $region9
    $region8: #{_lambda_.1} parent=1 // pred_region
      %s15 = ssub.s32 8192, 8192
      %16 = vsyncadd [#allocation3], %s15
      %s17 = sshll.u32 [#allocation2], 4
      %s18 = int_to_ptr.vmem [resolvable:$true] %s17
      %23 = dma.hbm_to_vmem [thread:$0]  %s1, 8192, %s18, [#allocation3], 128, 128, 8
    $region9: #{_lambda_.1} parent=1 // pred_fallthru
      _
    // Predicated region
    $region10: #{_lambda_.1} parent=1 // pred_check
      _
    $region11: #{_lambda_.1} parent=1 // pred_check_branch
      %25 = sbr.rel (0) target = $region13
    $region12: #{_lambda_.1} parent=1 // pred_region
      _
    $region13: #{_lambda_.1} parent=1 // pred_fallthru
      _
    // Predicated region
    $region14: #{_lambda_.1} parent=1 // pred_check
      _
    $region15: #{_lambda_.1} parent=1 // pred_check_branch
      %27 = sbr.rel (0) target = $region17
    $region16: #{_lambda_.1} parent=1 // pred_region
      %28 = dma.done [#allocation3], 8192
    $region17: #{_lambda_.1} parent=1 // pred_fallthru
      _
    %v29 = vld [vmem:[%s0] sm:$0xff]
    %v31 = vcombine.high %v29, %v29
    %v33 = vunpack.c.l.s4 1983009808
    %v34 = vunpack.c.0.s8 %v33
    %v35 = vlaneseq
    %v36 = vshrl.u32 %v35, 7
    %v37 = vsub.s32 %v34, %v36
    %v38 = vrot.slane %v29, %v37
    %v40 = vunpack.c.l.s4 1983009808
    %v41 = vunpack.c.0.s8 %v40
    %v42 = vlaneseq
    %v43 = vshrl.u32 %v42, 7
    %v44 = vsub.s32 %v41, %v43
    %v45 = vrot.slane %v31, %v44
    %v46 = vcombine.high %v38, %v38
    %v47 = vcombine.high %v45, %v45
    %v52 = vpack.c.bf16 %v38, %v38
    %v53 = vpack.c.bf16 %v46, %v46
    %v54 = vpack.c.bf16 %v45, %v45
    %v55 = vpack.c.bf16 %v47, %v47
    %v56 = vld [vmem:[#allocation2] sm:$0xff]
    %v57 = vld [vmem:[#allocation2 + $0x8] sm:$0xff]
    %v58 = vld [vmem:[#allocation2 + $0x10] sm:$0xff]
    %v59 = vld [vmem:[#allocation2 + $0x18] sm:$0xff]
    %v60 = vld [vmem:[#allocation2 + $0x20] sm:$0xff]
    %v61 = vld [vmem:[#allocation2 + $0x28] sm:$0xff]
    %v62 = vld [vmem:[#allocation2 + $0x30] sm:$0xff]
    %v63 = vld [vmem:[#allocation2 + $0x38] sm:$0xff]
    %v64 = vld [vmem:[#allocation2 + $0x40] sm:$0xff]
    %v65 = vld [vmem:[#allocation2 + $0x48] sm:$0xff]
    %v66 = vld [vmem:[#allocation2 + $0x50] sm:$0xff]
    %v67 = vld [vmem:[#allocation2 + $0x58] sm:$0xff]
    %v68 = vld [vmem:[#allocation2 + $0x60] sm:$0xff]
    %v69 = vld [vmem:[#allocation2 + $0x68] sm:$0xff]
    %v70 = vld [vmem:[#allocation2 + $0x70] sm:$0xff]
    %v71 = vld [vmem:[#allocation2 + $0x78] sm:$0xff]
    %v72 = vld [vmem:[#allocation2 + $0x80] sm:$0xff]
    %v73 = vld [vmem:[#allocation2 + $0x88] sm:$0xff]
    %v74 = vld [vmem:[#allocation2 + $0x90] sm:$0xff]
    %v75 = vld [vmem:[#allocation2 + $0x98] sm:$0xff]
    %v76 = vld [vmem:[#allocation2 + $0xa0] sm:$0xff]
    %v77 = vld [vmem:[#allocation2 + $0xa8] sm:$0xff]
    %v78 = vld [vmem:[#allocation2 + $0xb0] sm:$0xff]
    %v79 = vld [vmem:[#allocation2 + $0xb8] sm:$0xff]
    %v80 = vld [vmem:[#allocation2 + $0xc0] sm:$0xff]
    %v81 = vld [vmem:[#allocation2 + $0xc8] sm:$0xff]
    %v82 = vld [vmem:[#allocation2 + $0xd0] sm:$0xff]
    %v83 = vld [vmem:[#allocation2 + $0xd8] sm:$0xff]
    %v84 = vld [vmem:[#allocation2 + $0xe0] sm:$0xff]
    %v85 = vld [vmem:[#allocation2 + $0xe8] sm:$0xff]
    %v86 = vld [vmem:[#allocation2 + $0xf0] sm:$0xff]
    %v87 = vld [vmem:[#allocation2 + $0xf8] sm:$0xff]
    %v88 = vld [vmem:[#allocation2 + $0x100] sm:$0xff]
    %v89 = vld [vmem:[#allocation2 + $0x108] sm:$0xff]
    %v90 = vld [vmem:[#allocation2 + $0x110] sm:$0xff]
    %v91 = vld [vmem:[#allocation2 + $0x118] sm:$0xff]
    %v92 = vld [vmem:[#allocation2 + $0x120] sm:$0xff]
    %v93 = vld [vmem:[#allocation2 + $0x128] sm:$0xff]
    %v94 = vld [vmem:[#allocation2 + $0x130] sm:$0xff]
    %v95 = vld [vmem:[#allocation2 + $0x138] sm:$0xff]
    %v96 = vld [vmem:[#allocation2 + $0x140] sm:$0xff]
    %v97 = vld [vmem:[#allocation2 + $0x148] sm:$0xff]
    %v98 = vld [vmem:[#allocation2 + $0x150] sm:$0xff]
    %v99 = vld [vmem:[#allocation2 + $0x158] sm:$0xff]
    %v100 = vld [vmem:[#allocation2 + $0x160] sm:$0xff]
    %v101 = vld [vmem:[#allocation2 + $0x168] sm:$0xff]
    %v102 = vld [vmem:[#allocation2 + $0x170] sm:$0xff]
    %v103 = vld [vmem:[#allocation2 + $0x178] sm:$0xff]
    %v104 = vld [vmem:[#allocation2 + $0x180] sm:$0xff]
    %v105 = vld [vmem:[#allocation2 + $0x188] sm:$0xff]
    %v106 = vld [vmem:[#allocation2 + $0x190] sm:$0xff]
    %v107 = vld [vmem:[#allocation2 + $0x198] sm:$0xff]
    %v108 = vld [vmem:[#allocation2 + $0x1a0] sm:$0xff]
    %v109 = vld [vmem:[#allocation2 + $0x1a8] sm:$0xff]
    %v110 = vld [vmem:[#allocation2 + $0x1b0] sm:$0xff]
    %v111 = vld [vmem:[#allocation2 + $0x1b8] sm:$0xff]
    %v112 = vld [vmem:[#allocation2 + $0x1c0] sm:$0xff]
    %v113 = vld [vmem:[#allocation2 + $0x1c8] sm:$0xff]
    %v114 = vld [vmem:[#allocation2 + $0x1d0] sm:$0xff]
    %v115 = vld [vmem:[#allocation2 + $0x1d8] sm:$0xff]
    %v116 = vld [vmem:[#allocation2 + $0x1e0] sm:$0xff]
    %v117 = vld [vmem:[#allocation2 + $0x1e8] sm:$0xff]
    %v118 = vld [vmem:[#allocation2 + $0x1f0] sm:$0xff]
    %v119 = vld [vmem:[#allocation2 + $0x1f8] sm:$0xff]
    %v120 = vld [vmem:[%s2] sm:$0x3]
    %v122 = vlaneseq
    %v123 = vshrl.u32 %v122, 7
    %v124 = vsub.s32 0, %v123
    %v125 = vrot.slane %v120, %v124
    %v126 = vlaneseq
    %v127 = vshrl.u32 %v126, 7
    %v128 = vsub.s32 1, %v127
    %v129 = vrot.slane %v120, %v128
    %v196 = vunpack.c.l.b16 %v56
    %v197 = vunpack.c.h.b16 %v56
    %v198 = vunpack.c.l.b16 %v57
    %v199 = vunpack.c.h.b16 %v57
    %v200 = vunpack.c.l.b16 %v58
    %v201 = vunpack.c.h.b16 %v58
    %v202 = vunpack.c.l.b16 %v59
    %v203 = vunpack.c.h.b16 %v59
    %v204 = vunpack.c.l.b16 %v60
    %v205 = vunpack.c.h.b16 %v60
    %v206 = vunpack.c.l.b16 %v61
    %v207 = vunpack.c.h.b16 %v61
    %v208 = vunpack.c.l.b16 %v62
    %v209 = vunpack.c.h.b16 %v62
    %v210 = vunpack.c.l.b16 %v63
    %v211 = vunpack.c.h.b16 %v63
    %v212 = vunpack.c.l.b16 %v64
    %v213 = vunpack.c.h.b16 %v64
    %v214 = vunpack.c.l.b16 %v65
    %v215 = vunpack.c.h.b16 %v65
    %v216 = vunpack.c.l.b16 %v66
    %v217 = vunpack.c.h.b16 %v66
    %v218 = vunpack.c.l.b16 %v67
    %v219 = vunpack.c.h.b16 %v67
    %v220 = vunpack.c.l.b16 %v68
    %v221 = vunpack.c.h.b16 %v68
    %v222 = vunpack.c.l.b16 %v69
    %v223 = vunpack.c.h.b16 %v69
    %v224 = vunpack.c.l.b16 %v70
    %v225 = vunpack.c.h.b16 %v70
    %v226 = vunpack.c.l.b16 %v71
    %v227 = vunpack.c.h.b16 %v71
    %v228 = vunpack.c.l.b16 %v72
    %v229 = vunpack.c.h.b16 %v72
    %v230 = vunpack.c.l.b16 %v73
    %v231 = vunpack.c.h.b16 %v73
    %v232 = vunpack.c.l.b16 %v74
    %v233 = vunpack.c.h.b16 %v74
    %v234 = vunpack.c.l.b16 %v75
    %v235 = vunpack.c.h.b16 %v75
    %v236 = vunpack.c.l.b16 %v76
    %v237 = vunpack.c.h.b16 %v76
    %v238 = vunpack.c.l.b16 %v77
    %v239 = vunpack.c.h.b16 %v77
    %v240 = vunpack.c.l.b16 %v78
    %v241 = vunpack.c.h.b16 %v78
    %v242 = vunpack.c.l.b16 %v79
    %v243 = vunpack.c.h.b16 %v79
    %v244 = vunpack.c.l.b16 %v80
    %v245 = vunpack.c.h.b16 %v80
    %v246 = vunpack.c.l.b16 %v81
    %v247 = vunpack.c.h.b16 %v81
    %v248 = vunpack.c.l.b16 %v82
    %v249 = vunpack.c.h.b16 %v82
    %v250 = vunpack.c.l.b16 %v83
    %v251 = vunpack.c.h.b16 %v83
    %v252 = vunpack.c.l.b16 %v84
    %v253 = vunpack.c.h.b16 %v84
    %v254 = vunpack.c.l.b16 %v85
    %v255 = vunpack.c.h.b16 %v85
    %v256 = vunpack.c.l.b16 %v86
    %v257 = vunpack.c.h.b16 %v86
    %v258 = vunpack.c.l.b16 %v87
    %v259 = vunpack.c.h.b16 %v87
    %v260 = vunpack.c.l.b16 %v88
    %v261 = vunpack.c.h.b16 %v88
    %v262 = vunpack.c.l.b16 %v89
    %v263 = vunpack.c.h.b16 %v89
    %v264 = vunpack.c.l.b16 %v90
    %v265 = vunpack.c.h.b16 %v90
    %v266 = vunpack.c.l.b16 %v91
    %v267 = vunpack.c.h.b16 %v91
    %v268 = vunpack.c.l.b16 %v92
    %v269 = vunpack.c.h.b16 %v92
    %v270 = vunpack.c.l.b16 %v93
    %v271 = vunpack.c.h.b16 %v93
    %v272 = vunpack.c.l.b16 %v94
    %v273 = vunpack.c.h.b16 %v94
    %v274 = vunpack.c.l.b16 %v95
    %v275 = vunpack.c.h.b16 %v95
    %v276 = vunpack.c.l.b16 %v96
    %v277 = vunpack.c.h.b16 %v96
    %v278 = vunpack.c.l.b16 %v97
    %v279 = vunpack.c.h.b16 %v97
    %v280 = vunpack.c.l.b16 %v98
    %v281 = vunpack.c.h.b16 %v98
    %v282 = vunpack.c.l.b16 %v99
    %v283 = vunpack.c.h.b16 %v99
    %v284 = vunpack.c.l.b16 %v100
    %v285 = vunpack.c.h.b16 %v100
    %v286 = vunpack.c.l.b16 %v101
    %v287 = vunpack.c.h.b16 %v101
    %v288 = vunpack.c.l.b16 %v102
    %v289 = vunpack.c.h.b16 %v102
    %v290 = vunpack.c.l.b16 %v103
    %v291 = vunpack.c.h.b16 %v103
    %v292 = vunpack.c.l.b16 %v104
    %v293 = vunpack.c.h.b16 %v104
    %v294 = vunpack.c.l.b16 %v105
    %v295 = vunpack.c.h.b16 %v105
    %v296 = vunpack.c.l.b16 %v106
    %v297 = vunpack.c.h.b16 %v106
    %v298 = vunpack.c.l.b16 %v107
    %v299 = vunpack.c.h.b16 %v107
    %v300 = vunpack.c.l.b16 %v108
    %v301 = vunpack.c.h.b16 %v108
    %v302 = vunpack.c.l.b16 %v109
    %v303 = vunpack.c.h.b16 %v109
    %v304 = vunpack.c.l.b16 %v110
    %v305 = vunpack.c.h.b16 %v110
    %v306 = vunpack.c.l.b16 %v111
    %v307 = vunpack.c.h.b16 %v111
    %v308 = vunpack.c.l.b16 %v112
    %v309 = vunpack.c.h.b16 %v112
    %v310 = vunpack.c.l.b16 %v113
    %v311 = vunpack.c.h.b16 %v113
    %v312 = vunpack.c.l.b16 %v114
    %v313 = vunpack.c.h.b16 %v114
    %v314 = vunpack.c.l.b16 %v115
    %v315 = vunpack.c.h.b16 %v115
    %v316 = vunpack.c.l.b16 %v116
    %v317 = vunpack.c.h.b16 %v116
    %v318 = vunpack.c.l.b16 %v117
    %v319 = vunpack.c.h.b16 %v117
    %v320 = vunpack.c.l.b16 %v118
    %v321 = vunpack.c.h.b16 %v118
    %v322 = vunpack.c.l.b16 %v119
    %v323 = vunpack.c.h.b16 %v119
    %v324 = vpack.c.b16 %v198, %v196
    %v325 = vpack.c.b16 %v199, %v197
    %v326 = vpack.c.b16 %v202, %v200
    %v327 = vpack.c.b16 %v203, %v201
    %v328 = vpack.c.b16 %v206, %v204
    %v329 = vpack.c.b16 %v207, %v205
    %v330 = vpack.c.b16 %v210, %v208
    %v331 = vpack.c.b16 %v211, %v209
    %v332 = vpack.c.b16 %v214, %v212
    %v333 = vpack.c.b16 %v215, %v213
    %v334 = vpack.c.b16 %v218, %v216
    %v335 = vpack.c.b16 %v219, %v217
    %v336 = vpack.c.b16 %v222, %v220
    %v337 = vpack.c.b16 %v223, %v221
    %v338 = vpack.c.b16 %v226, %v224
    %v339 = vpack.c.b16 %v227, %v225
    %v340 = vpack.c.b16 %v230, %v228
    %v341 = vpack.c.b16 %v231, %v229
    %v342 = vpack.c.b16 %v234, %v232
    %v343 = vpack.c.b16 %v235, %v233
    %v344 = vpack.c.b16 %v238, %v236
    %v345 = vpack.c.b16 %v239, %v237
    %v346 = vpack.c.b16 %v242, %v240
    %v347 = vpack.c.b16 %v243, %v241
    %v348 = vpack.c.b16 %v246, %v244
    %v349 = vpack.c.b16 %v247, %v245
    %v350 = vpack.c.b16 %v250, %v248
    %v351 = vpack.c.b16 %v251, %v249
    %v352 = vpack.c.b16 %v254, %v252
    %v353 = vpack.c.b16 %v255, %v253
    %v354 = vpack.c.b16 %v258, %v256
    %v355 = vpack.c.b16 %v259, %v257
    %v356 = vpack.c.b16 %v262, %v260
    %v357 = vpack.c.b16 %v263, %v261
    %v358 = vpack.c.b16 %v266, %v264
    %v359 = vpack.c.b16 %v267, %v265
    %v360 = vpack.c.b16 %v270, %v268
    %v361 = vpack.c.b16 %v271, %v269
    %v362 = vpack.c.b16 %v274, %v272
    %v363 = vpack.c.b16 %v275, %v273
    %v364 = vpack.c.b16 %v278, %v276
    %v365 = vpack.c.b16 %v279, %v277
    %v366 = vpack.c.b16 %v282, %v280
    %v367 = vpack.c.b16 %v283, %v281
    %v368 = vpack.c.b16 %v286, %v284
    %v369 = vpack.c.b16 %v287, %v285
    %v370 = vpack.c.b16 %v290, %v288
    %v371 = vpack.c.b16 %v291, %v289
    %v372 = vpack.c.b16 %v294, %v292
    %v373 = vpack.c.b16 %v295, %v293
    %v374 = vpack.c.b16 %v298, %v296
    %v375 = vpack.c.b16 %v299, %v297
    %v376 = vpack.c.b16 %v302, %v300
    %v377 = vpack.c.b16 %v303, %v301
    %v378 = vpack.c.b16 %v306, %v304
    %v379 = vpack.c.b16 %v307, %v305
    %v380 = vpack.c.b16 %v310, %v308
    %v381 = vpack.c.b16 %v311, %v309
    %v382 = vpack.c.b16 %v314, %v312
    %v383 = vpack.c.b16 %v315, %v313
    %v384 = vpack.c.b16 %v318, %v316
    %v385 = vpack.c.b16 %v319, %v317
    %v386 = vpack.c.b16 %v322, %v320
    %v387 = vpack.c.b16 %v323, %v321
    %452 = vmatprep.subr.bf16.mxu0 %v325
    %453 = vmatpush1.bf16.msra.mxu0 %v324
    %454 = vmatprep.subr.bf16.mxu0 %v327
    %455 = vmatpush1.bf16.msra.mxu0 %v326
    %456 = vmatprep.subr.bf16.mxu0 %v329
    %457 = vmatpush1.bf16.msra.mxu0 %v328
    %458 = vmatprep.subr.bf16.mxu0 %v331
    %459 = vmatpush1.bf16.msra.mxu0 %v330
    %460 = vmatprep.subr.bf16.mxu0 %v333
    %461 = vmatpush1.bf16.msra.mxu0 %v332
    %462 = vmatprep.subr.bf16.mxu0 %v335
    %463 = vmatpush1.bf16.msra.mxu0 %v334
    %464 = vmatprep.subr.bf16.mxu0 %v337
    %465 = vmatpush1.bf16.msra.mxu0 %v336
    %466 = vmatprep.subr.bf16.mxu0 %v339
    %467 = vmatpush1.bf16.msra.mxu0 %v338
    %468 = vmatprep.subr.bf16.mxu0 %v341
    %469 = vmatpush1.bf16.msra.mxu0 %v340
    %470 = vmatprep.subr.bf16.mxu0 %v343
    %471 = vmatpush1.bf16.msra.mxu0 %v342
    %472 = vmatprep.subr.bf16.mxu0 %v345
    %473 = vmatpush1.bf16.msra.mxu0 %v344
    %474 = vmatprep.subr.bf16.mxu0 %v347
    %475 = vmatpush1.bf16.msra.mxu0 %v346
    %476 = vmatprep.subr.bf16.mxu0 %v349
    %477 = vmatpush1.bf16.msra.mxu0 %v348
    %478 = vmatprep.subr.bf16.mxu0 %v351
    %479 = vmatpush1.bf16.msra.mxu0 %v350
    %480 = vmatprep.subr.bf16.mxu0 %v353
    %481 = vmatpush1.bf16.msra.mxu0 %v352
    %482 = vmatprep.subr.bf16.mxu0 %v355
    %483 = vmatpush1.bf16.msra.mxu0 %v354
    %484 = vmatprep.mubr.bf16.mxu0 %v53
    %485 = vmatmul.mubr.bf16.gmra.mrb[0].mxu0 %v52
    %v486 = vpop.f32.mrb[0].mxu0
    %v487 = vadd.f32 %v125, %v486
    %v488 = vpop.f32.mrb[0].mxu0
    %v489 = vadd.f32 %v129, %v488
    %v490 = vpop.f32.mrb[0].mxu0
    %v491 = vpop.f32.mrb[0].mxu0
    %492 = vdwg.mxu0
    %493 = vmatprep.subr.bf16.mxu0 %v357
    %494 = vmatpush1.bf16.msra.mxu0 %v356
    %495 = vmatprep.subr.bf16.mxu0 %v359
    %496 = vmatpush1.bf16.msra.mxu0 %v358
    %497 = vmatprep.subr.bf16.mxu0 %v361
    %498 = vmatpush1.bf16.msra.mxu0 %v360
    %499 = vmatprep.subr.bf16.mxu0 %v363
    %500 = vmatpush1.bf16.msra.mxu0 %v362
    %501 = vmatprep.subr.bf16.mxu0 %v365
    %502 = vmatpush1.bf16.msra.mxu0 %v364
    %503 = vmatprep.subr.bf16.mxu0 %v367
    %504 = vmatpush1.bf16.msra.mxu0 %v366
    %505 = vmatprep.subr.bf16.mxu0 %v369
    %506 = vmatpush1.bf16.msra.mxu0 %v368
    %507 = vmatprep.subr.bf16.mxu0 %v371
    %508 = vmatpush1.bf16.msra.mxu0 %v370
    %509 = vmatprep.subr.bf16.mxu0 %v373
    %510 = vmatpush1.bf16.msra.mxu0 %v372
    %511 = vmatprep.subr.bf16.mxu0 %v375
    %512 = vmatpush1.bf16.msra.mxu0 %v374
    %513 = vmatprep.subr.bf16.mxu0 %v377
    %514 = vmatpush1.bf16.msra.mxu0 %v376
    %515 = vmatprep.subr.bf16.mxu0 %v379
    %516 = vmatpush1.bf16.msra.mxu0 %v378
    %517 = vmatprep.subr.bf16.mxu0 %v381
    %518 = vmatpush1.bf16.msra.mxu0 %v380
    %519 = vmatprep.subr.bf16.mxu0 %v383
    %520 = vmatpush1.bf16.msra.mxu0 %v382
    %521 = vmatprep.subr.bf16.mxu0 %v385
    %522 = vmatpush1.bf16.msra.mxu0 %v384
    %523 = vmatprep.subr.bf16.mxu0 %v387
    %524 = vmatpush1.bf16.msra.mxu0 %v386
    %525 = vmatprep.mubr.bf16.mxu0 %v55
    %526 = vmatmul.mubr.bf16.gmra.mrb[0].mxu0 %v54
    %v527 = vpop.f32.mrb[0].mxu0
    %v528 = vadd.f32 %v487, %v527
    %v529 = vpop.f32.mrb[0].mxu0
    %v530 = vadd.f32 %v489, %v529
    %v531 = vpop.f32.mrb[0].mxu0
    %v532 = vpop.f32.mrb[0].mxu0
    %533 = vdwg.mxu0
    %v536 = vcombine.low %v528, %v530
    %v538 = vunpack.c.l.s4 1983009808
    %v539 = vunpack.c.0.s8 %v538
    %v540 = vlaneseq
    %v541 = vshrl.u32 %v540, 7
    %v542 = vsub.s32 %v539, %v541
    %v543 = vrot.slane %v536, %v542
    %545 = vst [vmem:[#allocation5] sm:$0xf] %v543
    // Predicated region
    $region18: #{_lambda_.1} parent=1 // pred_check
      _
    $region19: #{_lambda_.1} parent=1 // pred_check_branch
      %547 = sbr.rel (0) target = $region21
    $region20: #{_lambda_.1} parent=1 // pred_region
      %s549 = ssub.s32 64, 64
      %550 = vsyncadd [#allocation4], %s549
      %s552 = sshll.u32 [#allocation5], 4
      %s553 = int_to_ptr.vmem [resolvable:$true] %s552
      %555 = dma.vmem_to_hbm [thread:$0]  %s553, 64, %s3, [#allocation4]
    $region21: #{_lambda_.1} parent=1 // pred_fallthru
      _
    // Predicated region
    $region22: #{_lambda_.1} parent=1 // pred_check
      _
    $region23: #{_lambda_.1} parent=1 // pred_check_branch
      %557 = sbr.rel (0) target = $region25
    $region24: #{_lambda_.1} parent=1 // pred_region
      %558 = dma.done [#allocation4], 64
    $region25: #{_lambda_.1} parent=1 // pred_fallthru
      _
    %559 = vsyncpa [#allocation3], 1
    %560 = vsyncpa [#allocation4], 1

</llo_original>
